<compile_context>
chip_gen: v7x
topology: tpu7x:2x2x1
jax: 0.10.0
libtpu: 0.0.40
codegen_flags: <defaults>
</compile_context>

<pallas_src>
import jax
import jax.numpy as jnp
from jax.experimental import pallas as pl
from jax.experimental.pallas import tpu as pltpu


def _round_up(x: int, mult: int) -> int:
    return ((x + mult - 1) // mult) * mult


# ---------------------------------------------------------------------------
# Kernels
# ---------------------------------------------------------------------------

def _fused_kernel(x_ref, w_ref, b_ref, o_ref):
    # Single collapsed matmul: y = x @ (W1.T @ W2.T) + b
    y = jnp.dot(x_ref[...], w_ref[...], preferred_element_type=jnp.float32)
    o_ref[...] = (y + b_ref[...]).astype(o_ref.dtype)


def _lowrank_kernel(x_ref, w1t_ref, w2t_ref, b_ref, o_ref):
    # Two chained MXU matmuls, both weights VMEM-resident.
    h = jnp.dot(x_ref[...], w1t_ref[...], preferred_element_type=jnp.float32)
    y = jnp.dot(h.astype(w2t_ref.dtype), w2t_ref[...],
                preferred_element_type=jnp.float32)
    o_ref[...] = (y + b_ref[...]).astype(o_ref.dtype)


def _stream_kernel(x_ref, w1t_ref, w2t_ref, b_ref, o_ref, h_ref):
    # W2 / bias / output streamed over out_p tiles (inner "arbitrary" axis);
    # h = x @ W1.T computed once per row tile and reused from VMEM scratch.
    @pl.when(pl.program_id(1) == 0)
    def _():
        h_ref[...] = jnp.dot(x_ref[...], w1t_ref[...],
                             preferred_element_type=jnp.float32).astype(h_ref.dtype)

    y = jnp.dot(h_ref[...], w2t_ref[...], preferred_element_type=jnp.float32)
    o_ref[...] = (y + b_ref[...]).astype(o_ref.dtype)


# ---------------------------------------------------------------------------
# Sizing helpers
# ---------------------------------------------------------------------------

def _vmem_capacity_bytes() -> int:
    try:
        cap = int(pltpu.get_tpu_info().vmem_capacity_bytes)
        if cap > 0:
            return cap
    except Exception:
        pass
    return 64 << 20  # conservative default: v7x per-TensorCore VMEM


def _choose_tm(m, resident_bytes, per_row_bytes, budget_bytes, tm_max):
    """Largest multiple-of-16 row tile whose footprint fits the budget; None if residents alone don't fit."""
    avail = budget_bytes - resident_bytes
    if avail < 16 * per_row_bytes:
        return None
    tm_fit = (avail // per_row_bytes) // 16 * 16
    tm_cap = _round_up(min(tm_max, max(m, 1)), 16)
    return int(max(16, min(tm_cap, tm_fit)))


# ---------------------------------------------------------------------------
# Wrapper
# ---------------------------------------------------------------------------

def lowrank_linear(x, w1, w2, b2, *, compute_dtype=jnp.bfloat16,
                   tm_max=1024, tn_max=512, force_mode=None):
    """x: [..., in_features] -> [..., out_features].

    w1: [intermediate_dim, in_features], w2: [out_features, intermediate_dim],
    b2: [out_features]  (PyTorch nn.Linear layouts).
    compute_dtype=bf16 runs the MXU at full rate with f32 accumulation
    (small numerics change vs the f32 PyTorch reference).
    """
    inter, in_features = w1.shape
    out_features = w2.shape[0]
    assert x.shape[-1] == in_features and w2.shape[1] == inter

    lead = x.shape[:-1]
    m = 1
    for d in lead:
        m *= d
    if m == 0:  # empty leading dims: nothing to compute
        return jnp.zeros((*lead, out_features), dtype=x.dtype)

    cdt = jnp.dtype(compute_dtype).itemsize
    osz = jnp.dtype(x.dtype).itemsize

    # ---- lane-dense padding (multiples of 128 on contracted / output dims) ----
    in_p = _round_up(in_features, 128)
    inter_p = _round_up(inter, 128)
    out_p = _round_up(out_features, 128)

    cap = _vmem_capacity_bytes()
    budget = int(cap * 0.70)

    # ---- mode selection ----
    # If 128-padding erases the low-rank FLOP/byte advantage, collapse the two
    # matmuls into a single x @ (W1.T @ W2.T).
    if force_mode is not None:
        mode = force_mode
    elif inter_p * (in_p + out_p) >= in_p * out_p:
        mode = "fused"
    else:
        mode = "lowrank"

    tn = None
    if mode == "lowrank":
        resident = (in_p * inter_p + inter_p * out_p) * cdt + out_p * 4
        per_row = 2 * in_p * cdt + 2 * out_p * osz + inter_p * (4 + cdt)
        tm = _choose_tm(m, resident, per_row, budget, tm_max)
        if tm is None:
            mode = "stream"  # resident weights alone overflow VMEM: stream W2 over out_p

    if mode == "stream":
        n_lane_blocks = out_p // 128
        k = max(1, min(tn_max // 128, n_lane_blocks))
        while n_lane_blocks % k != 0:
            k -= 1
        tn = 128 * k
        resident = in_p * inter_p * cdt + 2 * (inter_p * tn * cdt + tn * 4)
        per_row = 2 * in_p * cdt + 2 * tn * osz + inter_p * cdt + tn * 4
        tm = _choose_tm(m, resident, per_row, budget, tm_max)
        if tm is None:
            tm = 16  # TODO(synk): W1 plus one W2 tile still overflows VMEM; would need inter_p streaming too.

    if mode == "fused":
        resident = in_p * out_p * cdt + out_p * 4
        per_row = 2 * in_p * cdt + 2 * out_p * osz + out_p * 4
        tm = _choose_tm(m, resident, per_row, budget, tm_max)
        if tm is None:
            tm = 16  # TODO(synk): collapsed weight does not fit VMEM; would need out_p streaming in fused mode.

    m_pad = _round_up(m, tm)
    n_tiles = m_pad // tm

    # ---- operand prep (pad + pre-transpose + cast once in the wrapper) ----
    x2 = x.reshape(m, in_features).astype(compute_dtype)
    x2 = jnp.pad(x2, ((0, m_pad - m), (0, in_p - in_features)))

    w1t = w1.T.astype(jnp.float32)  # [in, inter]
    w2t = w2.T.astype(jnp.float32)  # [inter, out]
    b_p = jnp.pad(b2.astype(jnp.float32).reshape(1, out_features),
                  ((0, 0), (0, out_p - out_features)))  # bias kept in f32

    if mode == "fused":
        w_eff = jnp.dot(w1t, w2t, preferred_element_type=jnp.float32,
                        precision=jax.lax.Precision.HIGHEST)  # [in, out], one-time wrapper cost
        w_eff = jnp.pad(w_eff, ((0, in_p - in_features),
                                (0, out_p - out_features))).astype(compute_dtype)
        operands = (x2, w_eff, b_p)
        kernel = _fused_kernel
        flops = 2 * m * in_features * out_features
    else:
        w1t_p = jnp.pad(w1t, ((0, in_p - in_features),
                              (0, inter_p - inter))).astype(compute_dtype)
        w2t_p = jnp.pad(w2t, ((0, inter_p - inter),
                              (0, out_p - out_features))).astype(compute_dtype)
        operands = (x2, w1t_p, w2t_p, b_p)
        kernel = _lowrank_kernel if mode == "lowrank" else _stream_kernel
        flops = 2 * m * inter * (in_features + out_features)

    # ---- VMEM limit (generous: also covers the double-buffered-resident fallback) ----
    footprint = resident + tm * per_row
    vmem_limit = int(min(max(int((footprint + resident) * 1.2) + (2 << 20), 16 << 20),
                         int(cap * 0.875)))

    bytes_accessed = sum(int(op.size) * op.dtype.itemsize for op in operands) \
        + m_pad * out_p * osz
    cost = pl.CostEstimate(flops=flops, transcendentals=0,
                           bytes_accessed=bytes_accessed)

    out_shape = jax.ShapeDtypeStruct((m_pad, out_p), x.dtype)

    def run(single_buffer_resident):
        def rspec(shape, imap):
            # Resident operands (constant index_map): 1 buffer instead of the default 2.
            if single_buffer_resident:
                return pl.BlockSpec(shape, imap, pipeline_mode=pl.Buffered(1))
            return pl.BlockSpec(shape, imap)

        if mode == "fused":
            grid = (n_tiles,)
            in_specs = [
                pl.BlockSpec((tm, in_p), lambda i: (i, 0)),        # x tile (pipelined)
                rspec((in_p, out_p), lambda i: (0, 0)),            # W_eff resident
                rspec((1, out_p), lambda i: (0, 0)),               # bias resident
            ]
            out_specs = pl.BlockSpec((tm, out_p), lambda i: (i, 0))
            scratch = []
            dims = ("parallel",)
        elif mode == "lowrank":
            grid = (n_tiles,)
            in_specs = [
                pl.BlockSpec((tm, in_p), lambda i: (i, 0)),        # x tile (pipelined)
                rspec((in_p, inter_p), lambda i: (0, 0)),          # W1.T resident
                rspec((inter_p, out_p), lambda i: (0, 0)),         # W2.T resident
                rspec((1, out_p), lambda i: (0, 0)),               # bias resident
            ]
            out_specs = pl.BlockSpec((tm, out_p), lambda i: (i, 0))
            scratch = []
            dims = ("parallel",)
        else:  # stream
            grid = (n_tiles, out_p // tn)
            in_specs = [
                pl.BlockSpec((tm, in_p), lambda i, j: (i, 0)),     # x tile (constant over j)
                rspec((in_p, inter_p), lambda i, j: (0, 0)),       # W1.T resident
                pl.BlockSpec((inter_p, tn), lambda i, j: (0, j)),  # W2.T streamed over out_p
                pl.BlockSpec((1, tn), lambda i, j: (0, j)),        # bias streamed
            ]
            out_specs = pl.BlockSpec((tm, tn), lambda i, j: (i, j))
            scratch = [pltpu.VMEM((tm, inter_p), compute_dtype)]   # cached h = x @ W1.T
            dims = ("parallel", "arbitrary")

        return pl.pallas_call(
            kernel,
            out_shape=out_shape,
            grid_spec=pltpu.PrefetchScalarGridSpec(
                num_scalar_prefetch=0,
                grid=grid,
                in_specs=in_specs,
                out_specs=out_specs,
                scratch_shapes=scratch,
            ),
            compiler_params=pltpu.CompilerParams(
                dimension_semantics=dims,       # row tiles shard across v7x's 2 TCs
                vmem_limit_bytes=vmem_limit,
            ),
            cost_estimate=cost,
        )(*operands)

    try:
        out = run(True)
    except Exception:
        # pipeline_mode=pl.Buffered(1) not supported by this jax build:
        # fall back to default double-buffered residents (identical results).
        out = run(False)

    return out[:m, :out_features].reshape(*lead, out_features)


# ---------------------------------------------------------------------------
# Self-test
# ---------------------------------------------------------------------------

if __name__ == "__main__":
    def make_params(key, in_f, out_f, redn):
        # Mirrors LowrankLinear.__init__ (nn.Linear default-style uniform init).
        inter = int(in_f * out_f / ((in_f + out_f) * redn))
        assert inter > 0
        k1, k2, kb = jax.random.split(key, 3)
        bound1 = 1.0 / (in_f ** 0.5)
        bound2 = 1.0 / (inter ** 0.5)
        w1 = jax.random.uniform(k1, (inter, in_f), minval=-bound1, maxval=bound1,
                                dtype=jnp.float32)
        w2 = jax.random.uniform(k2, (out_f, inter), minval=-bound2, maxval=bound2,
                                dtype=jnp.float32)
        b2 = jax.random.uniform(kb, (out_f,), minval=-bound2, maxval=bound2,
                                dtype=jnp.float32)
        return w1, w2, b2

    key = jax.random.PRNGKey(0)
    kx1, kp1, kx2, kp2 = jax.random.split(key, 4)
    batch, seq = 2, 8

    # Case 1: module defaults (in=out=32, redn=1 -> inter=16).
    # Padding to 128 erases the low-rank advantage -> fused single-matmul path.
    in_f, out_f = 32, 32
    x1 = jax.random.normal(kx1, (batch, seq, in_f), dtype=jnp.float32)
    w1a, w2a, b2a = make_params(kp1, in_f, out_f, 1.0)
    y1 = lowrank_linear(x1, w1a, w2a, b2a)
    jax.block_until_ready(y1)
    ref1 = (x1 @ w1a.T) @ w2a.T + b2a
    assert y1.shape == (batch, seq, out_f)
    assert jnp.allclose(y1, ref1, atol=5e-2, rtol=5e-2), float(jnp.max(jnp.abs(y1 - ref1)))

    # Case 2: genuinely low-rank config (in=out=384, redn=3 -> inter=64):
    # exercises the resident two-matmul path.
    in_f, out_f = 384, 384
    x2 = jax.random.normal(kx2, (batch, seq, in_f), dtype=jnp.float32)
    w1b, w2b, b2b = make_params(kp2, in_f, out_f, 3.0)
    y2 = lowrank_linear(x2, w1b, w2b, b2b)
    jax.block_until_ready(y2)
    ref2 = (x2 @ w1b.T) @ w2b.T + b2b
    assert y2.shape == (batch, seq, out_f)
    assert jnp.allclose(y2, ref2, atol=5e-2, rtol=5e-2), float(jnp.max(jnp.abs(y2 - ref2)))

    # Case 3: same layer, forcing the W2-streaming fallback (multiple out_p tiles)
    # so the v7x large-weight path is compiled/verified too.
    y3 = lowrank_linear(x2, w1b, w2b, b2b, force_mode="stream", tn_max=128)
    jax.block_until_ready(y3)
    assert jnp.allclose(y3, ref2, atol=5e-2, rtol=5e-2), float(jnp.max(jnp.abs(y3 - ref2)))

    print("KERNEL_OK")
</pallas_src>

<mosaic_0001>
module attributes {stable_mosaic.version = 11 : i64} {
  func.func @_fused_kernel(%arg0: i32, %arg1: memref<16x128xbf16, #tpu.memory_space<vmem>>, %arg2: memref<128x128xbf16, #tpu.memory_space<vmem>>, %arg3: memref<1x128xf32, #tpu.memory_space<vmem>>, %arg4: memref<16x128xf32, #tpu.memory_space<vmem>>) attributes {dimension_semantics = [#tpu.dimension_semantics<parallel>], iteration_bounds = array<i64: 1>, scalar_prefetch = 0 : i64, scratch_operands = 0 : i64, tpu.core_type = #tpu.core_type<tc>, window_params = [{transform_indices = @transform_0, window_bounds = array<i64: 16, 128>}, {pipeline_mode = #tpu.pipeline_mode<synchronous>, transform_indices = @transform_1, window_bounds = array<i64: 128, 128>}, {pipeline_mode = #tpu.pipeline_mode<synchronous>, transform_indices = @transform_2, window_bounds = array<i64: 1, 128>}, {transform_indices = @transform_3, window_bounds = array<i64: 16, 128>}]} {
    %c0 = arith.constant 0 : index
    %c0_0 = arith.constant 0 : index
    %0 = vector.load %arg1[%c0, %c0_0] : memref<16x128xbf16, #tpu.memory_space<vmem>>, vector<16x128xbf16>
    %c0_1 = arith.constant 0 : index
    %c0_2 = arith.constant 0 : index
    %1 = vector.load %arg2[%c0_1, %c0_2] : memref<128x128xbf16, #tpu.memory_space<vmem>>, vector<128x128xbf16>
    %cst = arith.constant dense<0.000000e+00> : vector<16x128xf32>
    %2 = tpu.matmul %0, %1, %cst {dimension_numbers = #tpu.dot_dimension_numbers<[1], [0], [0], [1], [0, 0, 1, 1], [], []>} : vector<16x128xbf16>, vector<128x128xbf16>, vector<16x128xf32> -> vector<16x128xf32>
    %c0_3 = arith.constant 0 : index
    %c0_4 = arith.constant 0 : index
    %3 = vector.load %arg3[%c0_3, %c0_4] : memref<1x128xf32, #tpu.memory_space<vmem>>, vector<1x128xf32>
    %4 = vector.broadcast %3 : vector<1x128xf32> to vector<16x128xf32>
    %5 = arith.addf %2, %4 : vector<16x128xf32>
    %c0_5 = arith.constant 0 : index
    %c0_6 = arith.constant 0 : index
    %6 = vector.load %arg4[%c0_5, %c0_6] : memref<16x128xf32, #tpu.memory_space<vmem>>, vector<16x128xf32>
    tpu.vector_store %arg4[%c0_5, %c0_6], %5 {strides = array<i32>} : memref<16x128xf32, #tpu.memory_space<vmem>>, vector<16x128xf32>,
    return
  }
  func.func @transform_0(%arg0: i32) -> (i32, i32) {
    %c0_i32 = arith.constant 0 : i32
    %c0_i32_0 = arith.constant 0 : i32
    return %arg0, %c0_i32 : i32, i32
  }
  func.func @transform_1(%arg0: i32) -> (i32, i32) {
    %c0_i32 = arith.constant 0 : i32
    %c0_i32_0 = arith.constant 0 : i32
    %c0_i32_1 = arith.constant 0 : i32
    return %c0_i32, %c0_i32_0 : i32, i32
  }
  func.func @transform_2(%arg0: i32) -> (i32, i32) {
    %c0_i32 = arith.constant 0 : i32
    %c0_i32_0 = arith.constant 0 : i32
    %c0_i32_1 = arith.constant 0 : i32
    return %c0_i32, %c0_i32_0 : i32, i32
  }
  func.func @transform_3(%arg0: i32) -> (i32, i32) {
    %c0_i32 = arith.constant 0 : i32
    %c0_i32_0 = arith.constant 0 : i32
    return %arg0, %c0_i32 : i32, i32
  }
}

module attributes {stable_mosaic.version = 11 : i64} {
  func.func @_fused_kernel(%arg0: i32, %arg1: memref<16x128xbf16, #tpu.memory_space<vmem>>, %arg2: memref<128x128xbf16, #tpu.memory_space<vmem>>, %arg3: memref<1x128xf32, #tpu.memory_space<vmem>>, %arg4: memref<16x128xf32, #tpu.memory_space<vmem>>) attributes {dimension_semantics = [#tpu.dimension_semantics<parallel>], iteration_bounds = array<i64: 1>, scalar_prefetch = 0 : i64, scratch_operands = 0 : i64, tpu.core_type = #tpu.core_type<tc>, window_params = [{transform_indices = @transform_0, window_bounds = array<i64: 16, 128>}, {pipeline_mode = #tpu.pipeline_mode<synchronous>, transform_indices = @transform_1, window_bounds = array<i64: 128, 128>}, {pipeline_mode = #tpu.pipeline_mode<synchronous>, transform_indices = @transform_2, window_bounds = array<i64: 1, 128>}, {transform_indices = @transform_3, window_bounds = array<i64: 16, 128>}]} {
    %c0 = arith.constant 0 : index
    %c0_0 = arith.constant 0 : index
    %0 = vector.load %arg1[%c0, %c0_0] : memref<16x128xbf16, #tpu.memory_space<vmem>>, vector<16x128xbf16>
    %c0_1 = arith.constant 0 : index
    %c0_2 = arith.constant 0 : index
    %1 = vector.load %arg2[%c0_1, %c0_2] : memref<128x128xbf16, #tpu.memory_space<vmem>>, vector<128x128xbf16>
    %cst = arith.constant dense<0.000000e+00> : vector<16x128xf32>
    %2 = tpu.matmul %0, %1, %cst {dimension_numbers = #tpu.dot_dimension_numbers<[1], [0], [0], [1], [0, 0, 1, 1], [], []>} : vector<16x128xbf16>, vector<128x128xbf16>, vector<16x128xf32> -> vector<16x128xf32>
    %c0_3 = arith.constant 0 : index
    %c0_4 = arith.constant 0 : index
    %3 = vector.load %arg3[%c0_3, %c0_4] : memref<1x128xf32, #tpu.memory_space<vmem>>, vector<1x128xf32>
    %4 = vector.broadcast %3 : vector<1x128xf32> to vector<16x128xf32>
    %5 = arith.addf %2, %4 : vector<16x128xf32>
    %c0_5 = arith.constant 0 : index
    %c0_6 = arith.constant 0 : index
    %6 = vector.load %arg4[%c0_5, %c0_6] : memref<16x128xf32, #tpu.memory_space<vmem>>, vector<16x128xf32>
    tpu.vector_store %arg4[%c0_5, %c0_6], %5 {strides = array<i32>} : memref<16x128xf32, #tpu.memory_space<vmem>>, vector<16x128xf32>,
    return
  }
  func.func @transform_0(%arg0: i32) -> (i32, i32) {
    %c0_i32 = arith.constant 0 : i32
    %c0_i32_0 = arith.constant 0 : i32
    return %arg0, %c0_i32 : i32, i32
  }
  func.func @transform_1(%arg0: i32) -> (i32, i32) {
    %c0_i32 = arith.constant 0 : i32
    %c0_i32_0 = arith.constant 0 : i32
    %c0_i32_1 = arith.constant 0 : i32
    return %c0_i32, %c0_i32_0 : i32, i32
  }
  func.func @transform_2(%arg0: i32) -> (i32, i32) {
    %c0_i32 = arith.constant 0 : i32
    %c0_i32_0 = arith.constant 0 : i32
    %c0_i32_1 = arith.constant 0 : i32
    return %c0_i32, %c0_i32_0 : i32, i32
  }
  func.func @transform_3(%arg0: i32) -> (i32, i32) {
    %c0_i32 = arith.constant 0 : i32
    %c0_i32_0 = arith.constant 0 : i32
    return %arg0, %c0_i32 : i32, i32
  }
}

</mosaic_0001>

<llo_original>
// kernel: tpu_custom_call.1
$region0: #{tpu_custom_call.1}
  #allocation0 [shape = 'u32[]', space=smem, size = 0x4, offset = 0x4, fixed_abs, tag = 'smem constant byte address 0x4 - core index']
  #allocation1 [shape = 'u32[144,128]{1,0:T(1,128)}', space=vmem, size = 0x12000, scoped, tag = 'internal scratch']
  %s0 = inlined_call_operand.hbm [shape: bf16[16,128], index: 0, kind: input, shape index: {}]
  %s1 = inlined_call_operand.hbm [shape: bf16[128,128], index: 1, kind: input, shape index: {}]
  %s2 = inlined_call_operand.vmem [shape: f32[1,128], index: 2, kind: input, shape index: {}]
  %s3 = inlined_call_operand.hbm [shape: f32[16,128], index: 3, kind: output, shape index: {}]
  %s4 = sld [smem:[#allocation0]]
  $region30: #{tpu_custom_call.1} parent=0
    _
  %s6 = ssub.s32 1, %s4
  %s7 = scalar_select 0, %s6, %s4
  $region1: #{tpu_custom_call.1} parent=0
    #allocation2 [shape = 'u8[4096]{0}', space=vmem, size = 0x1000, scoped, tag = 'input window, operand 0, single buffered']
    #allocation3 [shape = 's32[1]{0}', space=sflag, size = 0x4, scoped, tag = 'scoped memory for tpu_custom_call.1']
    #allocation4 [shape = 's32[1]{0}', space=sflag, size = 0x4, scoped, tag = 'scoped memory for tpu_custom_call.1']
    #allocation5 [shape = 'u8[32768]{0}', space=vmem, size = 0x8000, scoped, tag = 'input window, operand 1, single buffered']
    #allocation6 [shape = 's32[1]{0}', space=sflag, size = 0x4, scoped, tag = 'scoped memory for tpu_custom_call.1']
    #allocation7 [shape = 'u8[8192]{0}', space=vmem, size = 0x2000, scoped, tag = 'output window, operand 0, single buffered']
    %8 = vsyncpa [#allocation3], 0
    %9 = vsyncpa [#allocation6], 0
    %10 = vsyncpa [#allocation4], 0
    // Predicated region
    $region2: #{tpu_custom_call.1} parent=1 // pred_check
      _
    $region3: #{tpu_custom_call.1} parent=1 // pred_check_branch
      %12 = sbr.rel (0) target = $region5
    $region4: #{tpu_custom_call.1} parent=1 // pred_region
      %s14 = ssub.s32 128, 128
      %15 = vsyncadd [#allocation3], %s14
      %s16 = sshll.u32 [#allocation2], 4
      %s17 = int_to_ptr.vmem [resolvable:$true] %s16
      %22 = dma.hbm_to_vmem [thread:$0]  %s0, 128, %s17, [#allocation3], 64, 64, 4
    $region5: #{tpu_custom_call.1} parent=1 // pred_fallthru
      _
    // Predicated region
    $region6: #{tpu_custom_call.1} parent=1 // pred_check
      _
    $region7: #{tpu_custom_call.1} parent=1 // pred_check_branch
      %24 = sbr.rel (0) target = $region9
    $region8: #{tpu_custom_call.1} parent=1 // pred_region
      %s26 = ssub.s32 1024, 1024
      %27 = vsyncadd [#allocation6], %s26
      %s28 = sshll.u32 [#allocation5], 4
      %s29 = int_to_ptr.vmem [resolvable:$true] %s28
      %34 = dma.hbm_to_vmem [thread:$0]  %s1, 1024, %s29, [#allocation6], 64, 64, 4
    $region9: #{tpu_custom_call.1} parent=1 // pred_fallthru
      _
    // Predicated region
    $region10: #{tpu_custom_call.1} parent=1 // pred_check
      _
    $region11: #{tpu_custom_call.1} parent=1 // pred_check_branch
      %36 = sbr.rel (0) target = $region13
    $region12: #{tpu_custom_call.1} parent=1 // pred_region
      _
    $region13: #{tpu_custom_call.1} parent=1 // pred_fallthru
      _
    // Predicated region
    $region14: #{tpu_custom_call.1} parent=1 // pred_check
      _
    $region15: #{tpu_custom_call.1} parent=1 // pred_check_branch
      %38 = sbr.rel (0) target = $region17
    $region16: #{tpu_custom_call.1} parent=1 // pred_region
      %39 = dma.done [#allocation3], 128
    $region17: #{tpu_custom_call.1} parent=1 // pred_fallthru
      _
    // Predicated region
    $region18: #{tpu_custom_call.1} parent=1 // pred_check
      _
    $region19: #{tpu_custom_call.1} parent=1 // pred_check_branch
      %41 = sbr.rel (0) target = $region21
    $region20: #{tpu_custom_call.1} parent=1 // pred_region
      %42 = dma.done [#allocation6], 1024
    $region21: #{tpu_custom_call.1} parent=1 // pred_fallthru
      _
    %v44 = vld [vmem:[#allocation2] sm:$0xf]
    %v45 = vld [vmem:[#allocation2 + $0x4] sm:$0xf]
    %v46 = vld [vmem:[#allocation5] sm:$0xf]
    %v47 = vld [vmem:[#allocation5 + $0x4] sm:$0xf]
    %v48 = vld [vmem:[#allocation5 + $0x8] sm:$0xf]
    %v49 = vld [vmem:[#allocation5 + $0xc] sm:$0xf]
    %v50 = vld [vmem:[#allocation5 + $0x10] sm:$0xf]
    %v51 = vld [vmem:[#allocation5 + $0x14] sm:$0xf]
    %v52 = vld [vmem:[#allocation5 + $0x18] sm:$0xf]
    %v53 = vld [vmem:[#allocation5 + $0x1c] sm:$0xf]
    %v54 = vld [vmem:[#allocation5 + $0x20] sm:$0xf]
    %v55 = vld [vmem:[#allocation5 + $0x24] sm:$0xf]
    %v56 = vld [vmem:[#allocation5 + $0x28] sm:$0xf]
    %v57 = vld [vmem:[#allocation5 + $0x2c] sm:$0xf]
    %v58 = vld [vmem:[#allocation5 + $0x30] sm:$0xf]
    %v59 = vld [vmem:[#allocation5 + $0x34] sm:$0xf]
    %v60 = vld [vmem:[#allocation5 + $0x38] sm:$0xf]
    %v61 = vld [vmem:[#allocation5 + $0x3c] sm:$0xf]
    %v62 = vld [vmem:[%s2] sm:$0x1]
    %v64 = vlaneseq
    %v65 = vshrl.u32 %v64, 7
    %v66 = vsub.s32 0, %v65
    %v67 = vrot.slane %v62, %v66
    %v71 = vunpack.c.l.b16 %v44
    %v72 = vunpack.c.l.b16 %v45
    %v73 = vpack.c.b16 %v72, %v71
    %v91 = vunpack.c.l.b16 %v46
    %v92 = vunpack.c.l.b16 %v47
    %v93 = vunpack.c.l.b16 %v48
    %v94 = vunpack.c.l.b16 %v49
    %v95 = vunpack.c.l.b16 %v50
    %v96 = vunpack.c.l.b16 %v51
    %v97 = vunpack.c.l.b16 %v52
    %v98 = vunpack.c.l.b16 %v53
    %v99 = vunpack.c.l.b16 %v54
    %v100 = vunpack.c.l.b16 %v55
    %v101 = vunpack.c.l.b16 %v56
    %v102 = vunpack.c.l.b16 %v57
    %v103 = vunpack.c.l.b16 %v58
    %v104 = vunpack.c.l.b16 %v59
    %v105 = vunpack.c.l.b16 %v60
    %v106 = vunpack.c.l.b16 %v61
    %v107 = vpack.c.b16 %v92, %v91
    %v108 = vpack.c.b16 %v94, %v93
    %v109 = vpack.c.b16 %v96, %v95
    %v110 = vpack.c.b16 %v98, %v97
    %v111 = vpack.c.b16 %v100, %v99
    %v112 = vpack.c.b16 %v102, %v101
    %v113 = vpack.c.b16 %v104, %v103
    %v114 = vpack.c.b16 %v106, %v105
    %123 = vmatprep.subr.bf16.mxu0 0
    %124 = vmatpush1.bf16.msra.mxu0 %v107
    %125 = vmatprep.subr.bf16.mxu0 0
    %126 = vmatpush1.bf16.msra.mxu0 %v108
    %127 = vmatprep.subr.bf16.mxu0 0
    %128 = vmatpush1.bf16.msra.mxu0 %v109
    %129 = vmatprep.subr.bf16.mxu0 0
    %130 = vmatpush1.bf16.msra.mxu0 %v110
    %131 = vmatprep.subr.bf16.mxu0 0
    %132 = vmatpush1.bf16.msra.mxu0 %v111
    %133 = vmatprep.subr.bf16.mxu0 0
    %134 = vmatpush1.bf16.msra.mxu0 %v112
    %135 = vmatprep.subr.bf16.mxu0 0
    %136 = vmatpush1.bf16.msra.mxu0 %v113
    %137 = vmatprep.subr.bf16.mxu0 0
    %138 = vmatpush1.bf16.msra.mxu0 %v114
    %139 = vmatprep.subr.bf16.mxu0 0
    %140 = vmatpush1.bf16.msra.mxu0 0
    %141 = vmatprep.subr.bf16.mxu0 0
    %142 = vmatpush1.bf16.msra.mxu0 0
    %143 = vmatprep.subr.bf16.mxu0 0
    %144 = vmatpush1.bf16.msra.mxu0 0
    %145 = vmatprep.subr.bf16.mxu0 0
    %146 = vmatpush1.bf16.msra.mxu0 0
    %147 = vmatprep.subr.bf16.mxu0 0
    %148 = vmatpush1.bf16.msra.mxu0 0
    %149 = vmatprep.subr.bf16.mxu0 0
    %150 = vmatpush1.bf16.msra.mxu0 0
    %151 = vmatprep.subr.bf16.mxu0 0
    %152 = vmatpush1.bf16.msra.mxu0 0
    %153 = vmatprep.subr.bf16.mxu0 0
    %154 = vmatpush1.bf16.msra.mxu0 0
    %155 = vmatprep.mubr.bf16.mxu0 0
    %156 = vmatmul.mubr.bf16.gmra.mrb[0].mxu0 %v73
    %v157 = vpop.f32.mrb[0].mxu0
    %v158 = vadd.f32 %v67, %v157
    %v159 = vpop.f32.mrb[0].mxu0
    %v160 = vpop.f32.mrb[0].mxu0
    %v161 = vadd.f32 %v67, %v160
    %v162 = vpop.f32.mrb[0].mxu0
    %163 = vdwg.mxu0
    %164 = vst [vmem:[#allocation7] sm:$0xff] %v158
    %165 = vst [vmem:[#allocation7 + $0x8] sm:$0xff] %v161
    // Predicated region
    $region22: #{tpu_custom_call.1} parent=1 // pred_check
      _
    $region23: #{tpu_custom_call.1} parent=1 // pred_check_branch
      %167 = sbr.rel (0) target = $region25
    $region24: #{tpu_custom_call.1} parent=1 // pred_region
      %s169 = ssub.s32 256, 256
      %170 = vsyncadd [#allocation4], %s169
      %s171 = sshll.u32 [#allocation7], 4
      %s172 = int_to_ptr.vmem [resolvable:$true] %s171
      %177 = dma.vmem_to_hbm [thread:$0]  %s172, 256, %s3, [#allocation4], 128, 128, 8
    $region25: #{tpu_custom_call.1} parent=1 // pred_fallthru
      _
    // Predicated region
    $region26: #{tpu_custom_call.1} parent=1 // pred_check
      _
    $region27: #{tpu_custom_call.1} parent=1 // pred_check_branch
      %179 = sbr.rel (0) target = $region29
    $region28: #{tpu_custom_call.1} parent=1 // pred_region
      %180 = dma.done [#allocation4], 256
    $region29: #{tpu_custom_call.1} parent=1 // pred_fallthru
      _
    %181 = vsyncpa [#allocation3], 1
    %182 = vsyncpa [#allocation6], 1
    %183 = vsyncpa [#allocation4], 1

// kernel: tpu_custom_call.1
$region0: #{tpu_custom_call.1}
  #allocation0 [shape = 'u32[]', space=smem, size = 0x4, offset = 0x4, fixed_abs, tag = 'smem constant byte address 0x4 - core index']
  #allocation1 [shape = 'u32[144,128]{1,0:T(1,128)}', space=vmem, size = 0x12000, scoped, tag = 'internal scratch']
  %s0 = inlined_call_operand.hbm [shape: bf16[16,128], index: 0, kind: input, shape index: {}]
  %s1 = inlined_call_operand.hbm [shape: bf16[128,128], index: 1, kind: input, shape index: {}]
  %s2 = inlined_call_operand.vmem [shape: f32[1,128], index: 2, kind: input, shape index: {}]
  %s3 = inlined_call_operand.hbm [shape: f32[16,128], index: 3, kind: output, shape index: {}]
  %s4 = sld [smem:[#allocation0]]
  $region30: #{tpu_custom_call.1} parent=0
    _
  %s6 = ssub.s32 1, %s4
  %s7 = scalar_select 0, %s6, %s4
  $region1: #{tpu_custom_call.1} parent=0
    #allocation2 [shape = 'u8[4096]{0}', space=vmem, size = 0x1000, scoped, tag = 'input window, operand 0, single buffered']
    #allocation3 [shape = 's32[1]{0}', space=sflag, size = 0x4, scoped, tag = 'scoped memory for tpu_custom_call.1']
    #allocation4 [shape = 's32[1]{0}', space=sflag, size = 0x4, scoped, tag = 'scoped memory for tpu_custom_call.1']
    #allocation5 [shape = 'u8[32768]{0}', space=vmem, size = 0x8000, scoped, tag = 'input window, operand 1, single buffered']
    #allocation6 [shape = 's32[1]{0}', space=sflag, size = 0x4, scoped, tag = 'scoped memory for tpu_custom_call.1']
    #allocation7 [shape = 'u8[8192]{0}', space=vmem, size = 0x2000, scoped, tag = 'output window, operand 0, single buffered']
    %8 = vsyncpa [#allocation3], 0
    %9 = vsyncpa [#allocation6], 0
    %10 = vsyncpa [#allocation4], 0
    // Predicated region
    $region2: #{tpu_custom_call.1} parent=1 // pred_check
      _
    $region3: #{tpu_custom_call.1} parent=1 // pred_check_branch
      %12 = sbr.rel (0) target = $region5
    $region4: #{tpu_custom_call.1} parent=1 // pred_region
      %s14 = ssub.s32 128, 128
      %15 = vsyncadd [#allocation3], %s14
      %s16 = sshll.u32 [#allocation2], 4
      %s17 = int_to_ptr.vmem [resolvable:$true] %s16
      %22 = dma.hbm_to_vmem [thread:$0]  %s0, 128, %s17, [#allocation3], 64, 64, 4
    $region5: #{tpu_custom_call.1} parent=1 // pred_fallthru
      _
    // Predicated region
    $region6: #{tpu_custom_call.1} parent=1 // pred_check
      _
    $region7: #{tpu_custom_call.1} parent=1 // pred_check_branch
      %24 = sbr.rel (0) target = $region9
    $region8: #{tpu_custom_call.1} parent=1 // pred_region
      %s26 = ssub.s32 1024, 1024
      %27 = vsyncadd [#allocation6], %s26
      %s28 = sshll.u32 [#allocation5], 4
      %s29 = int_to_ptr.vmem [resolvable:$true] %s28
      %34 = dma.hbm_to_vmem [thread:$0]  %s1, 1024, %s29, [#allocation6], 64, 64, 4
    $region9: #{tpu_custom_call.1} parent=1 // pred_fallthru
      _
    // Predicated region
    $region10: #{tpu_custom_call.1} parent=1 // pred_check
      _
    $region11: #{tpu_custom_call.1} parent=1 // pred_check_branch
      %36 = sbr.rel (0) target = $region13
    $region12: #{tpu_custom_call.1} parent=1 // pred_region
      _
    $region13: #{tpu_custom_call.1} parent=1 // pred_fallthru
      _
    // Predicated region
    $region14: #{tpu_custom_call.1} parent=1 // pred_check
      _
    $region15: #{tpu_custom_call.1} parent=1 // pred_check_branch
      %38 = sbr.rel (0) target = $region17
    $region16: #{tpu_custom_call.1} parent=1 // pred_region
      %39 = dma.done [#allocation3], 128
    $region17: #{tpu_custom_call.1} parent=1 // pred_fallthru
      _
    // Predicated region
    $region18: #{tpu_custom_call.1} parent=1 // pred_check
      _
    $region19: #{tpu_custom_call.1} parent=1 // pred_check_branch
      %41 = sbr.rel (0) target = $region21
    $region20: #{tpu_custom_call.1} parent=1 // pred_region
      %42 = dma.done [#allocation6], 1024
    $region21: #{tpu_custom_call.1} parent=1 // pred_fallthru
      _
    %v44 = vld [vmem:[#allocation2] sm:$0xf]
    %v45 = vld [vmem:[#allocation2 + $0x4] sm:$0xf]
    %v46 = vld [vmem:[#allocation5] sm:$0xf]
    %v47 = vld [vmem:[#allocation5 + $0x4] sm:$0xf]
    %v48 = vld [vmem:[#allocation5 + $0x8] sm:$0xf]
    %v49 = vld [vmem:[#allocation5 + $0xc] sm:$0xf]
    %v50 = vld [vmem:[#allocation5 + $0x10] sm:$0xf]
    %v51 = vld [vmem:[#allocation5 + $0x14] sm:$0xf]
    %v52 = vld [vmem:[#allocation5 + $0x18] sm:$0xf]
    %v53 = vld [vmem:[#allocation5 + $0x1c] sm:$0xf]
    %v54 = vld [vmem:[#allocation5 + $0x20] sm:$0xf]
    %v55 = vld [vmem:[#allocation5 + $0x24] sm:$0xf]
    %v56 = vld [vmem:[#allocation5 + $0x28] sm:$0xf]
    %v57 = vld [vmem:[#allocation5 + $0x2c] sm:$0xf]
    %v58 = vld [vmem:[#allocation5 + $0x30] sm:$0xf]
    %v59 = vld [vmem:[#allocation5 + $0x34] sm:$0xf]
    %v60 = vld [vmem:[#allocation5 + $0x38] sm:$0xf]
    %v61 = vld [vmem:[#allocation5 + $0x3c] sm:$0xf]
    %v62 = vld [vmem:[%s2] sm:$0x1]
    %v64 = vlaneseq
    %v65 = vshrl.u32 %v64, 7
    %v66 = vsub.s32 0, %v65
    %v67 = vrot.slane %v62, %v66
    %v71 = vunpack.c.l.b16 %v44
    %v72 = vunpack.c.l.b16 %v45
    %v73 = vpack.c.b16 %v72, %v71
    %v91 = vunpack.c.l.b16 %v46
    %v92 = vunpack.c.l.b16 %v47
    %v93 = vunpack.c.l.b16 %v48
    %v94 = vunpack.c.l.b16 %v49
    %v95 = vunpack.c.l.b16 %v50
    %v96 = vunpack.c.l.b16 %v51
    %v97 = vunpack.c.l.b16 %v52
    %v98 = vunpack.c.l.b16 %v53
    %v99 = vunpack.c.l.b16 %v54
    %v100 = vunpack.c.l.b16 %v55
    %v101 = vunpack.c.l.b16 %v56
    %v102 = vunpack.c.l.b16 %v57
    %v103 = vunpack.c.l.b16 %v58
    %v104 = vunpack.c.l.b16 %v59
    %v105 = vunpack.c.l.b16 %v60
    %v106 = vunpack.c.l.b16 %v61
    %v107 = vpack.c.b16 %v92, %v91
    %v108 = vpack.c.b16 %v94, %v93
    %v109 = vpack.c.b16 %v96, %v95
    %v110 = vpack.c.b16 %v98, %v97
    %v111 = vpack.c.b16 %v100, %v99
    %v112 = vpack.c.b16 %v102, %v101
    %v113 = vpack.c.b16 %v104, %v103
    %v114 = vpack.c.b16 %v106, %v105
    %123 = vmatprep.subr.bf16.mxu0 0
    %124 = vmatpush1.bf16.msra.mxu0 %v107
    %125 = vmatprep.subr.bf16.mxu0 0
    %126 = vmatpush1.bf16.msra.mxu0 %v108
    %127 = vmatprep.subr.bf16.mxu0 0
    %128 = vmatpush1.bf16.msra.mxu0 %v109
    %129 = vmatprep.subr.bf16.mxu0 0
    %130 = vmatpush1.bf16.msra.mxu0 %v110
    %131 = vmatprep.subr.bf16.mxu0 0
    %132 = vmatpush1.bf16.msra.mxu0 %v111
    %133 = vmatprep.subr.bf16.mxu0 0
    %134 = vmatpush1.bf16.msra.mxu0 %v112
    %135 = vmatprep.subr.bf16.mxu0 0
    %136 = vmatpush1.bf16.msra.mxu0 %v113
    %137 = vmatprep.subr.bf16.mxu0 0
    %138 = vmatpush1.bf16.msra.mxu0 %v114
    %139 = vmatprep.subr.bf16.mxu0 0
    %140 = vmatpush1.bf16.msra.mxu0 0
    %141 = vmatprep.subr.bf16.mxu0 0
    %142 = vmatpush1.bf16.msra.mxu0 0
    %143 = vmatprep.subr.bf16.mxu0 0
    %144 = vmatpush1.bf16.msra.mxu0 0
    %145 = vmatprep.subr.bf16.mxu0 0
    %146 = vmatpush1.bf16.msra.mxu0 0
    %147 = vmatprep.subr.bf16.mxu0 0
    %148 = vmatpush1.bf16.msra.mxu0 0
    %149 = vmatprep.subr.bf16.mxu0 0
    %150 = vmatpush1.bf16.msra.mxu0 0
    %151 = vmatprep.subr.bf16.mxu0 0
    %152 = vmatpush1.bf16.msra.mxu0 0
    %153 = vmatprep.subr.bf16.mxu0 0
    %154 = vmatpush1.bf16.msra.mxu0 0
    %155 = vmatprep.mubr.bf16.mxu0 0
    %156 = vmatmul.mubr.bf16.gmra.mrb[0].mxu0 %v73
    %v157 = vpop.f32.mrb[0].mxu0
    %v158 = vadd.f32 %v67, %v157
    %v159 = vpop.f32.mrb[0].mxu0
    %v160 = vpop.f32.mrb[0].mxu0
    %v161 = vadd.f32 %v67, %v160
    %v162 = vpop.f32.mrb[0].mxu0
    %163 = vdwg.mxu0
    %164 = vst [vmem:[#allocation7] sm:$0xff] %v158
    %165 = vst [vmem:[#allocation7 + $0x8] sm:$0xff] %v161
    // Predicated region
    $region22: #{tpu_custom_call.1} parent=1 // pred_check
      _
    $region23: #{tpu_custom_call.1} parent=1 // pred_check_branch
      %167 = sbr.rel (0) target = $region25
    $region24: #{tpu_custom_call.1} parent=1 // pred_region
      %s169 = ssub.s32 256, 256
      %170 = vsyncadd [#allocation4], %s169
      %s171 = sshll.u32 [#allocation7], 4
      %s172 = int_to_ptr.vmem [resolvable:$true] %s171
      %177 = dma.vmem_to_hbm [thread:$0]  %s172, 256, %s3, [#allocation4], 128, 128, 8
    $region25: #{tpu_custom_call.1} parent=1 // pred_fallthru
      _
    // Predicated region
    $region26: #{tpu_custom_call.1} parent=1 // pred_check
      _
    $region27: #{tpu_custom_call.1} parent=1 // pred_check_branch
      %179 = sbr.rel (0) target = $region29
    $region28: #{tpu_custom_call.1} parent=1 // pred_region
      %180 = dma.done [#allocation4], 256
    $region29: #{tpu_custom_call.1} parent=1 // pred_fallthru
      _
    %181 = vsyncpa [#allocation3], 1
    %182 = vsyncpa [#allocation6], 1
    %183 = vsyncpa [#allocation4], 1

</llo_original>
